<compile_context>
chip_gen: v7x
topology: tpu7x:2x2x1
jax: 0.10.0
libtpu: 0.0.40
codegen_flags: <defaults>
</compile_context>

<pallas_src>
import functools
import math

import jax
import jax.numpy as jnp
from jax import lax
from jax.experimental import pallas as pl
from jax.experimental.pallas import tpu as pltpu

_LN_EPS = 1e-12
_TILE_BUDGET = 40 * 1024 * 1024          # target VMEM footprint when picking tm
_VMEM_CLAMP = 56 * 1024 * 1024           # hard cap: leave headroom under v7x 64 MiB
_TM_CANDIDATES = (1024, 512, 256, 128, 64, 32, 16, 8)


def _pick_tile(dim, candidates):
    """Largest candidate that evenly divides `dim`, else the full dim."""
    for c in candidates:
        if dim % c == 0:
            return c
    return dim


def _pick_tm(M, est_fn, budget=_TILE_BUDGET):
    """Largest M-tile from the candidate list whose estimated VMEM fits budget."""
    divisors = [t for t in _TM_CANDIDATES if M % t == 0]
    if not divisors:
        return M
    for tm in divisors:                  # descending order
        if est_fn(tm) <= budget:
            return tm
    return divisors[-1]


def _vmem_limit(est_bytes):
    """Per-kernel VMEM request: estimate + margin, clamped under v7x physical."""
    return int(min(max(est_bytes * 1.25 + (2 << 20), 16 << 20), _VMEM_CLAMP))


def _gelu(y):
    # tanh-approx GELU (BERT "gelu"); exact-erf variant differs by <1e-3
    return 0.5 * y * (1.0 + jnp.tanh(0.7978845608028654 * (y + 0.044715 * y * y * y)))


def _layernorm_f32(h, gamma, beta, eps):
    mean = jnp.mean(h, axis=-1, keepdims=True)
    var = jnp.mean((h - mean) * (h - mean), axis=-1, keepdims=True)
    return (h - mean) * lax.rsqrt(var + eps) * gamma + beta


# ---------------------------------------------------------------------------
# Kernel: tiled matmul  y = act(x @ W + b)      (bf16 in, fp32 acc, bf16 out)
# ---------------------------------------------------------------------------
def _matmul_bias_act_kernel(x_ref, w_ref, b_ref, o_ref, acc_ref, *, activation):
    k = pl.program_id(1)

    @pl.when(k == 0)
    def _():
        acc_ref[...] = jnp.zeros_like(acc_ref)

    acc_ref[...] += jnp.dot(x_ref[...], w_ref[...], preferred_element_type=jnp.float32)

    @pl.when(k == pl.num_programs(1) - 1)
    def _():
        y = acc_ref[...] + b_ref[...]
        if activation == "gelu":
            y = _gelu(y)
        elif activation == "tanh":
            y = jnp.tanh(y)
        o_ref[...] = y.astype(o_ref.dtype)


def matmul_bias_act(x, w, b, activation="none", out_dtype=jnp.bfloat16):
    M, K = x.shape
    N = w.shape[1]
    tk = _pick_tile(K, (512, 256, 128))

    def est(tm):
        return (2 * tm * tk * 2      # x blocks (double-buffered bf16)
                + 2 * tk * N * 2     # w blocks
                + 2 * tm * N * 2     # out blocks
                + tm * N * 4         # fp32 accumulator
                + 2 * N * 4)         # bias

    tm = _pick_tm(M, est)
    return pl.pallas_call(
        functools.partial(_matmul_bias_act_kernel, activation=activation),
        out_shape=jax.ShapeDtypeStruct((M, N), out_dtype),
        grid=(M // tm, K // tk),
        in_specs=[
            pl.BlockSpec((tm, tk), lambda i, k: (i, k)),
            pl.BlockSpec((tk, N), lambda i, k: (k, 0)),
            pl.BlockSpec((1, N), lambda i, k: (0, 0)),
        ],
        out_specs=pl.BlockSpec((tm, N), lambda i, k: (i, 0)),
        scratch_shapes=[pltpu.VMEM((tm, N), jnp.float32)],
        compiler_params=pltpu.CompilerParams(
            dimension_semantics=("parallel", "arbitrary"),
            vmem_limit_bytes=_vmem_limit(est(tm))),
    )(x, w, b.reshape(1, N))


# ---------------------------------------------------------------------------
# Kernel: tiled matmul + bias + residual + LayerNorm epilogue
# ---------------------------------------------------------------------------
def _matmul_res_ln_kernel(x_ref, w_ref, b_ref, r_ref, g_ref, beta_ref,
                          o_ref, acc_ref, *, eps):
    k = pl.program_id(1)

    @pl.when(k == 0)
    def _():
        acc_ref[...] = jnp.zeros_like(acc_ref)

    acc_ref[...] += jnp.dot(x_ref[...], w_ref[...], preferred_element_type=jnp.float32)

    @pl.when(k == pl.num_programs(1) - 1)
    def _():
        h = acc_ref[...] + b_ref[...] + r_ref[...].astype(jnp.float32)
        o_ref[...] = _layernorm_f32(h, g_ref[...], beta_ref[...], eps).astype(o_ref.dtype)


def matmul_res_ln(x, w, b, residual, gamma, beta, eps=_LN_EPS, out_dtype=jnp.bfloat16):
    M, K = x.shape
    N = w.shape[1]
    tk = _pick_tile(K, (512, 256, 128))

    def est(tm):
        return (2 * tm * tk * 2
                + 2 * tk * N * 2
                + 2 * tm * N * 2     # out
                + 2 * tm * N * 2     # residual
                + tm * N * 4         # fp32 accumulator
                + 6 * N * 4)         # bias + ln params

    tm = _pick_tm(M, est)
    return pl.pallas_call(
        functools.partial(_matmul_res_ln_kernel, eps=eps),
        out_shape=jax.ShapeDtypeStruct((M, N), out_dtype),
        grid=(M // tm, K // tk),
        in_specs=[
            pl.BlockSpec((tm, tk), lambda i, k: (i, k)),
            pl.BlockSpec((tk, N), lambda i, k: (k, 0)),
            pl.BlockSpec((1, N), lambda i, k: (0, 0)),
            pl.BlockSpec((tm, N), lambda i, k: (i, 0)),
            pl.BlockSpec((1, N), lambda i, k: (0, 0)),
            pl.BlockSpec((1, N), lambda i, k: (0, 0)),
        ],
        out_specs=pl.BlockSpec((tm, N), lambda i, k: (i, 0)),
        scratch_shapes=[pltpu.VMEM((tm, N), jnp.float32)],
        compiler_params=pltpu.CompilerParams(
            dimension_semantics=("parallel", "arbitrary"),
            vmem_limit_bytes=_vmem_limit(est(tm))),
    )(x, w, b.reshape(1, N), residual, gamma.reshape(1, N), beta.reshape(1, N))


# ---------------------------------------------------------------------------
# Kernel: fused FFN  LayerNorm(x + (GELU(x@Wi+bi))@Wo2 + bo2)
#   The intermediate dimension I is tiled on an 'arbitrary' grid axis:
#   each step computes GELU(x @ Wi[:, chunk] + bi[chunk]) and accumulates
#   chunk @ Wo2[chunk, :] into a (tm, H) fp32 VMEM scratch, so neither Wi nor
#   Wo2 is ever fully resident (critical for v7x's 64 MiB VMEM, BERT-large).
# ---------------------------------------------------------------------------
def _ffn_kernel(x_ref, wi_ref, bi_ref, wo2_ref, bo2_ref, g_ref, beta_ref,
                o_ref, acc_ref, *, eps):
    j = pl.program_id(1)

    @pl.when(j == 0)
    def _():
        acc_ref[...] = jnp.zeros_like(acc_ref)

    x = x_ref[...]                                                     # (tm, H) bf16
    inter = jnp.dot(x, wi_ref[...], preferred_element_type=jnp.float32) + bi_ref[...]
    inter = _gelu(inter)
    acc_ref[...] += jnp.dot(inter.astype(jnp.bfloat16), wo2_ref[...],
                            preferred_element_type=jnp.float32)

    @pl.when(j == pl.num_programs(1) - 1)
    def _():
        h = acc_ref[...] + bo2_ref[...] + x.astype(jnp.float32)
        o_ref[...] = _layernorm_f32(h, g_ref[...], beta_ref[...], eps).astype(o_ref.dtype)


def ffn_fused(x, wi, bi, wo2, bo2, gamma, beta, eps=_LN_EPS, out_dtype=jnp.bfloat16):
    M, H = x.shape
    I = wi.shape[1]
    ti = _pick_tile(I, (1024, 512, 256, 128))

    def est(tm):
        return (2 * tm * H * 2       # x blocks
                + 2 * H * ti * 2     # Wi chunk
                + 2 * ti * H * 2     # Wo2 chunk
                + 2 * tm * H * 2     # out
                + tm * H * 4         # fp32 accumulator
                + 2 * tm * ti * 4    # GELU intermediate temporaries
                + (2 * ti + 6 * H) * 4)

    tm = _pick_tm(M, est)
    return pl.pallas_call(
        functools.partial(_ffn_kernel, eps=eps),
        out_shape=jax.ShapeDtypeStruct((M, H), out_dtype),
        grid=(M // tm, I // ti),
        in_specs=[
            pl.BlockSpec((tm, H), lambda i, j: (i, 0)),
            pl.BlockSpec((H, ti), lambda i, j: (0, j)),
            pl.BlockSpec((1, ti), lambda i, j: (0, j)),
            pl.BlockSpec((ti, H), lambda i, j: (j, 0)),
            pl.BlockSpec((1, H), lambda i, j: (0, 0)),
            pl.BlockSpec((1, H), lambda i, j: (0, 0)),
            pl.BlockSpec((1, H), lambda i, j: (0, 0)),
        ],
        out_specs=pl.BlockSpec((tm, H), lambda i, j: (i, 0)),
        scratch_shapes=[pltpu.VMEM((tm, H), jnp.float32)],
        compiler_params=pltpu.CompilerParams(
            dimension_semantics=("parallel", "arbitrary"),
            vmem_limit_bytes=_vmem_limit(est(tm))),
    )(x, wi, bi.reshape(1, I), wo2, bo2.reshape(1, H),
      gamma.reshape(1, H), beta.reshape(1, H))


# ---------------------------------------------------------------------------
# Kernel: attention — one batch row (all heads) per grid step.
# Q/K/V arrive as three lane-dense (S, H) blocks (DMA does the 3H column split);
# per-head contexts are stored directly into the output block (no concat), and
# the score matmul contracts last dims (no explicit k.T transpose).
# ---------------------------------------------------------------------------
def _attention_kernel(q_ref, k_ref, v_ref, m_ref, o_ref, *,
                      num_heads, head_dim, scale):
    q3 = q_ref[0]                          # (S, H) bf16
    k3 = k_ref[0]
    v3 = v_ref[0]
    bias = m_ref[0]                        # (1, S) fp32, broadcast over query rows
    for h in range(num_heads):
        sl = slice(h * head_dim, (h + 1) * head_dim)
        q = q3[:, sl]
        k = k3[:, sl]
        v = v3[:, sl]
        s = lax.dot_general(q, k, (((1,), (1,)), ((), ())),
                            preferred_element_type=jnp.float32)
        s = s * scale + bias
        s = s - jnp.max(s, axis=-1, keepdims=True)
        # fp32 exp keeps v5e-safe behaviour; bf16 exp is a v6e/v7x-only EUP win.
        p = jnp.exp(s)
        p = p * pl.reciprocal(jnp.sum(p, axis=-1, keepdims=True), approx=True)
        ctx = jnp.dot(p.astype(v.dtype), v, preferred_element_type=jnp.float32)
        o_ref[0, :, sl] = ctx.astype(o_ref.dtype)


def attention(qkv, mask_bias, num_heads, head_dim, out_dtype=jnp.bfloat16):
    # qkv: (B, S, 3H) bf16;  mask_bias: (B, 1, S) fp32
    # TODO(synk): for S >= ~1024 switch to a KV-tiled online-softmax (flash) variant;
    #             the full (S, S) fp32 score block grows quadratically.
    B, S, threeH = qkv.shape
    H = threeH // 3
    est = (3 * 2 * S * H * 2        # q/k/v blocks (double-buffered bf16)
           + 2 * S * H * 2          # out block
           + 2 * S * 4              # mask
           + 3 * S * S * 4          # score/prob temporaries
           + 2 * S * head_dim * 4)  # per-head context temporaries
    return pl.pallas_call(
        functools.partial(_attention_kernel, num_heads=num_heads,
                          head_dim=head_dim, scale=1.0 / math.sqrt(head_dim)),
        out_shape=jax.ShapeDtypeStruct((B, S, H), out_dtype),
        grid=(B,),
        in_specs=[
            pl.BlockSpec((1, S, H), lambda b: (b, 0, 0)),   # Q columns of fused QKV
            pl.BlockSpec((1, S, H), lambda b: (b, 0, 1)),   # K columns
            pl.BlockSpec((1, S, H), lambda b: (b, 0, 2)),   # V columns
            pl.BlockSpec((1, 1, S), lambda b: (b, 0, 0)),
        ],
        out_specs=pl.BlockSpec((1, S, H), lambda b: (b, 0, 0)),
        compiler_params=pltpu.CompilerParams(
            dimension_semantics=("parallel",),
            vmem_limit_bytes=_vmem_limit(est)),
    )(qkv, qkv, qkv, mask_bias)


# ---------------------------------------------------------------------------
# Kernel: row-tiled LayerNorm (embedding LN only; no residual)
# ---------------------------------------------------------------------------
def _layernorm_kernel(x_ref, g_ref, b_ref, o_ref, *, eps):
    h = x_ref[...].astype(jnp.float32)
    o_ref[...] = _layernorm_f32(h, g_ref[...], b_ref[...], eps).astype(o_ref.dtype)


def layernorm(x, gamma, beta, eps=_LN_EPS, out_dtype=jnp.bfloat16):
    M, H = x.shape
    tm = _pick_tile(M, (512, 256, 128, 64, 32, 16, 8))
    return pl.pallas_call(
        functools.partial(_layernorm_kernel, eps=eps),
        out_shape=jax.ShapeDtypeStruct((M, H), out_dtype),
        grid=(M // tm,),
        in_specs=[
            pl.BlockSpec((tm, H), lambda i: (i, 0)),
            pl.BlockSpec((1, H), lambda i: (0, 0)),
            pl.BlockSpec((1, H), lambda i: (0, 0)),
        ],
        out_specs=pl.BlockSpec((tm, H), lambda i: (i, 0)),
        compiler_params=pltpu.CompilerParams(dimension_semantics=("parallel",)),
    )(x, gamma.reshape(1, H), beta.reshape(1, H))


# ---------------------------------------------------------------------------
# Kernel: fused pooler(tanh) + classifier, logits padded to a 128-wide lane slab
# ---------------------------------------------------------------------------
def _pooler_cls_kernel(x_ref, wp_ref, bp_ref, wc_ref, bc_ref, o_ref):
    pooled = jnp.dot(x_ref[...], wp_ref[...], preferred_element_type=jnp.float32)
    pooled = jnp.tanh(pooled + bp_ref[...])
    logits = jnp.dot(pooled.astype(jnp.bfloat16), wc_ref[...],
                     preferred_element_type=jnp.float32) + bc_ref[...]
    o_ref[...] = logits


def pooler_classifier(x_cls, pooler_w, pooler_b, cls_w_pad, cls_b_pad):
    B, H = x_cls.shape
    Lp = cls_w_pad.shape[1]
    return pl.pallas_call(
        _pooler_cls_kernel,
        out_shape=jax.ShapeDtypeStruct((B, Lp), jnp.float32),
        grid=(1,),
        in_specs=[
            pl.BlockSpec((B, H), lambda i: (0, 0)),
            pl.BlockSpec((H, H), lambda i: (0, 0)),
            pl.BlockSpec((1, H), lambda i: (0, 0)),
            pl.BlockSpec((H, Lp), lambda i: (0, 0)),
            pl.BlockSpec((1, Lp), lambda i: (0, 0)),
        ],
        out_specs=pl.BlockSpec((B, Lp), lambda i: (0, 0)),
    )(x_cls, pooler_w, pooler_b.reshape(1, H), cls_w_pad, cls_b_pad.reshape(1, Lp))


# ---------------------------------------------------------------------------
# Parameter construction (deterministic, BERT-style init) and packing
# ---------------------------------------------------------------------------
def init_params(key, cfg):
    H, I = cfg["hidden_size"], cfg["intermediate_size"]

    def normal(key, shape):
        return 0.02 * jax.random.normal(key, shape, dtype=jnp.float32)

    keys = iter(jax.random.split(key, 8 + cfg["num_layers"] * 8))
    params = {
        "word_emb": normal(next(keys), (cfg["vocab_size"], H)),
        "pos_emb": normal(next(keys), (cfg["max_position_embeddings"], H)),
        "type_emb": normal(next(keys), (cfg["type_vocab_size"], H)),
        "emb_ln_g": jnp.ones((H,), jnp.float32),
        "emb_ln_b": jnp.zeros((H,), jnp.float32),
        "pooler_w": normal(next(keys), (H, H)),
        "pooler_b": jnp.zeros((H,), jnp.float32),
        "cls_w": normal(next(keys), (H, cfg["num_labels"])),
        "cls_b": jnp.zeros((cfg["num_labels"],), jnp.float32),
        "layers": [],
    }
    for _ in range(cfg["num_layers"]):
        params["layers"].append(
            {
                "wq": normal(next(keys), (H, H)), "bq": jnp.zeros((H,), jnp.float32),
                "wk": normal(next(keys), (H, H)), "bk": jnp.zeros((H,), jnp.float32),
                "wv": normal(next(keys), (H, H)), "bv": jnp.zeros((H,), jnp.float32),
                "wo": normal(next(keys), (H, H)), "bo": jnp.zeros((H,), jnp.float32),
                "attn_ln_g": jnp.ones((H,), jnp.float32),
                "attn_ln_b": jnp.zeros((H,), jnp.float32),
                "wi": normal(next(keys), (H, I)), "bi": jnp.zeros((I,), jnp.float32),
                "wo2": normal(next(keys), (I, H)), "bo2": jnp.zeros((H,), jnp.float32),
                "ffn_ln_g": jnp.ones((H,), jnp.float32),
                "ffn_ln_b": jnp.zeros((H,), jnp.float32),
            }
        )
    return params


def prepare_params(params, cfg):
    """Pack for the fused kernels: bf16 weights (MXU), fp32 biases/LN params,
    fused QKV weight, classifier padded to a 128-multiple lane width."""
    # TODO(synk): weight-only int8 (v5e/v6e) / fp8 (v7x) with dequant scales folded
    #             into the matmul epilogues would halve weight HBM traffic further.
    H = cfg["hidden_size"]
    L = cfg["num_labels"]
    Lp = ((L + 127) // 128) * 128

    cls_w_pad = jnp.zeros((H, Lp), jnp.float32).at[:, :L].set(params["cls_w"])
    cls_b_pad = jnp.zeros((Lp,), jnp.float32).at[:L].set(params["cls_b"])

    prepared = {
        "word_emb": params["word_emb"],
        "pos_emb": params["pos_emb"],
        "type_emb": params["type_emb"],
        "emb_ln_g": params["emb_ln_g"],
        "emb_ln_b": params["emb_ln_b"],
        "pooler_w": params["pooler_w"].astype(jnp.bfloat16),
        "pooler_b": params["pooler_b"],
        "cls_w_pad": cls_w_pad.astype(jnp.bfloat16),
        "cls_b_pad": cls_b_pad,
        "num_labels": L,
        "layers": [],
    }
    for lyr in params["layers"]:
        prepared["layers"].append(
            {
                "w_qkv": jnp.concatenate([lyr["wq"], lyr["wk"], lyr["wv"]],
                                         axis=1).astype(jnp.bfloat16),
                "b_qkv": jnp.concatenate([lyr["bq"], lyr["bk"], lyr["bv"]]),
                "wo": lyr["wo"].astype(jnp.bfloat16), "bo": lyr["bo"],
                "attn_ln_g": lyr["attn_ln_g"], "attn_ln_b": lyr["attn_ln_b"],
                "wi": lyr["wi"].astype(jnp.bfloat16), "bi": lyr["bi"],
                "wo2": lyr["wo2"].astype(jnp.bfloat16), "bo2": lyr["bo2"],
                "ffn_ln_g": lyr["ffn_ln_g"], "ffn_ln_b": lyr["ffn_ln_b"],
            }
        )
    return prepared


# ---------------------------------------------------------------------------
# BertForClassification forward (inference / eval mode)
# ---------------------------------------------------------------------------
def bert_for_classification(prepared, input_ids, token_type_ids, attention_mask, cfg):
    B, S = input_ids.shape
    H = cfg["hidden_size"]
    nH = cfg["num_heads"]
    Dh = H // nH
    M = B * S

    # --- embeddings (plain-JAX gathers) + Pallas LayerNorm --------------------
    emb = (
        prepared["word_emb"][input_ids]
        + prepared["pos_emb"][:S][None, :, :]
        + prepared["type_emb"][token_type_ids]
    )
    x = layernorm(emb.reshape(M, H), prepared["emb_ln_g"], prepared["emb_ln_b"])  # bf16

    # extended attention mask: (1 - mask) * -10000, broadcast over heads / queries
    mask_bias = ((1.0 - attention_mask.astype(jnp.float32)) * -10000.0).reshape(B, 1, S)

    # --- encoder layers --------------------------------------------------------
    for layer in prepared["layers"]:
        qkv = matmul_bias_act(x, layer["w_qkv"], layer["b_qkv"])            # (M, 3H)
        ctx = attention(qkv.reshape(B, S, 3 * H), mask_bias, nH, Dh)        # (B, S, H)
        x = matmul_res_ln(ctx.reshape(M, H), layer["wo"], layer["bo"],
                          x, layer["attn_ln_g"], layer["attn_ln_b"])
        x = ffn_fused(x, layer["wi"], layer["bi"], layer["wo2"], layer["bo2"],
                      layer["ffn_ln_g"], layer["ffn_ln_b"])

    # --- pooler (bert(...)[1]) + dropout(identity in eval) + classifier -------
    cls_tok = x.reshape(B, S, H)[:, 0, :]                                   # (B, H) bf16
    logits_pad = pooler_classifier(cls_tok, prepared["pooler_w"], prepared["pooler_b"],
                                   prepared["cls_w_pad"], prepared["cls_b_pad"])
    return logits_pad[:, :prepared["num_labels"]]


# ---------------------------------------------------------------------------
if __name__ == "__main__":
    cfg = dict(
        vocab_size=50,
        hidden_size=128,
        num_layers=2,
        num_heads=2,
        intermediate_size=256,
        max_position_embeddings=16,
        type_vocab_size=2,
        num_labels=2,
    )
    B, S = 2, 8

    key = jax.random.PRNGKey(0)
    k_param, k_ids = jax.random.split(key)
    params = init_params(k_param, cfg)
    prepared = prepare_params(params, cfg)

    input_ids = jax.random.randint(k_ids, (B, S), 0, cfg["vocab_size"], dtype=jnp.int32)
    token_type_ids = jnp.zeros((B, S), jnp.int32)
    attention_mask = jnp.ones((B, S), jnp.int32).at[1, 6:].set(0)  # pad tail of sample 1

    logits = bert_for_classification(prepared, input_ids, token_type_ids,
                                     attention_mask, cfg)
    jax.block_until_ready(logits)
    assert logits.shape == (B, cfg["num_labels"])
    print("KERNEL_OK")
</pallas_src>

<mosaic_0001>
module attributes {stable_mosaic.version = 11 : i64} {
  func.func @_layernorm_kernel(%arg0: i32, %arg1: memref<16x128xf32, #tpu.memory_space<vmem>>, %arg2: memref<1x128xf32, #tpu.memory_space<vmem>>, %arg3: memref<1x128xf32, #tpu.memory_space<vmem>>, %arg4: memref<16x128xbf16, #tpu.memory_space<vmem>>) attributes {dimension_semantics = [#tpu.dimension_semantics<parallel>], iteration_bounds = array<i64: 1>, scalar_prefetch = 0 : i64, scratch_operands = 0 : i64, tpu.core_type = #tpu.core_type<tc>, window_params = [{transform_indices = @transform_0, window_bounds = array<i64: 16, 128>}, {pipeline_mode = #tpu.pipeline_mode<synchronous>, transform_indices = @transform_1, window_bounds = array<i64: 1, 128>}, {pipeline_mode = #tpu.pipeline_mode<synchronous>, transform_indices = @transform_2, window_bounds = array<i64: 1, 128>}, {transform_indices = @transform_3, window_bounds = array<i64: 16, 128>}]} {
    %c0 = arith.constant 0 : index
    %c0_0 = arith.constant 0 : index
    %0 = vector.load %arg1[%c0, %c0_0] : memref<16x128xf32, #tpu.memory_space<vmem>>, vector<16x128xf32>
    %c0_1 = arith.constant 0 : index
    %c0_2 = arith.constant 0 : index
    %1 = vector.load %arg2[%c0_1, %c0_2] : memref<1x128xf32, #tpu.memory_space<vmem>>, vector<1x128xf32>
    %c0_3 = arith.constant 0 : index
    %c0_4 = arith.constant 0 : index
    %2 = vector.load %arg3[%c0_3, %c0_4] : memref<1x128xf32, #tpu.memory_space<vmem>>, vector<1x128xf32>
    %cst = arith.constant dense<0.000000e+00> : vector<16xf32>
    %3 = vector.multi_reduction <add>, %0, %cst [1] : vector<16x128xf32> to vector<16xf32>
    %4 = vector.shape_cast %3 : vector<16xf32> to vector<16x1xf32>
    %cst_5 = arith.constant 1.280000e+02 : f32
    %5 = vector.broadcast %cst_5 : f32 to vector<16x1xf32>
    %6 = arith.divf %4, %5 : vector<16x1xf32>
    %7 = vector.broadcast %6 : vector<16x1xf32> to vector<16x128xf32>
    %8 = arith.subf %0, %7 : vector<16x128xf32>
    %9 = vector.broadcast %6 : vector<16x1xf32> to vector<16x128xf32>
    %10 = arith.subf %0, %9 : vector<16x128xf32>
    %11 = arith.mulf %8, %10 : vector<16x128xf32>
    %cst_6 = arith.constant dense<0.000000e+00> : vector<16xf32>
    %12 = vector.multi_reduction <add>, %11, %cst_6 [1] : vector<16x128xf32> to vector<16xf32>
    %13 = vector.shape_cast %12 : vector<16xf32> to vector<16x1xf32>
    %cst_7 = arith.constant 1.280000e+02 : f32
    %14 = vector.broadcast %cst_7 : f32 to vector<16x1xf32>
    %15 = arith.divf %13, %14 : vector<16x1xf32>
    %16 = vector.broadcast %6 : vector<16x1xf32> to vector<16x128xf32>
    %17 = arith.subf %0, %16 : vector<16x128xf32>
    %cst_8 = arith.constant 9.99999996E-13 : f32
    %18 = vector.broadcast %cst_8 : f32 to vector<16x1xf32>
    %19 = arith.addf %15, %18 : vector<16x1xf32>
    %20 = math.rsqrt %19 : vector<16x1xf32>
    %21 = vector.broadcast %20 : vector<16x1xf32> to vector<16x128xf32>
    %22 = arith.mulf %17, %21 : vector<16x128xf32>
    %23 = vector.broadcast %1 : vector<1x128xf32> to vector<16x128xf32>
    %24 = arith.mulf %22, %23 : vector<16x128xf32>
    %25 = vector.broadcast %2 : vector<1x128xf32> to vector<16x128xf32>
    %26 = arith.addf %24, %25 : vector<16x128xf32>
    %27 = arith.truncf %26 : vector<16x128xf32> to vector<16x128xbf16>
    %c0_9 = arith.constant 0 : index
    %c0_10 = arith.constant 0 : index
    %28 = vector.load %arg4[%c0_9, %c0_10] : memref<16x128xbf16, #tpu.memory_space<vmem>>, vector<16x128xbf16>
    tpu.vector_store %arg4[%c0_9, %c0_10], %27 {strides = array<i32>} : memref<16x128xbf16, #tpu.memory_space<vmem>>, vector<16x128xbf16>,
    return
  }
  func.func @transform_0(%arg0: i32) -> (i32, i32) {
    %c0_i32 = arith.constant 0 : i32
    %c0_i32_0 = arith.constant 0 : i32
    return %arg0, %c0_i32 : i32, i32
  }
  func.func @transform_1(%arg0: i32) -> (i32, i32) {
    %c0_i32 = arith.constant 0 : i32
    %c0_i32_0 = arith.constant 0 : i32
    %c0_i32_1 = arith.constant 0 : i32
    return %c0_i32, %c0_i32_0 : i32, i32
  }
  func.func @transform_2(%arg0: i32) -> (i32, i32) {
    %c0_i32 = arith.constant 0 : i32
    %c0_i32_0 = arith.constant 0 : i32
    %c0_i32_1 = arith.constant 0 : i32
    return %c0_i32, %c0_i32_0 : i32, i32
  }
  func.func @transform_3(%arg0: i32) -> (i32, i32) {
    %c0_i32 = arith.constant 0 : i32
    %c0_i32_0 = arith.constant 0 : i32
    return %arg0, %c0_i32 : i32, i32
  }
}

</mosaic_0001>

<llo_original>
// kernel: tpu_custom_call.1
$region0: #{tpu_custom_call.1}
  #allocation0 [shape = 'u32[]', space=smem, size = 0x4, offset = 0x4, fixed_abs, tag = 'smem constant byte address 0x4 - core index']
  #allocation1 [shape = 'u32[144,128]{1,0:T(1,128)}', space=vmem, size = 0x12000, scoped, tag = 'internal scratch']
  %s0 = inlined_call_operand.hbm [shape: f32[16,128], index: 0, kind: input, shape index: {}]
  %s1 = inlined_call_operand.vmem [shape: f32[1,128], index: 1, kind: input, shape index: {}]
  %s2 = inlined_call_operand.vmem [shape: f32[1,128], index: 2, kind: input, shape index: {}]
  %s3 = inlined_call_operand.hbm [shape: bf16[16,128], index: 3, kind: output, shape index: {}]
  %s4 = sld [smem:[#allocation0]]
  $region26: #{tpu_custom_call.1} parent=0
    _
  %s6 = ssub.s32 1, %s4
  %s7 = scalar_select 0, %s6, %s4
  $region1: #{tpu_custom_call.1} parent=0
    #allocation2 [shape = 'u8[8192]{0}', space=vmem, size = 0x2000, scoped, tag = 'input window, operand 0, single buffered']
    #allocation3 [shape = 's32[1]{0}', space=sflag, size = 0x4, scoped, tag = 'scoped memory for tpu_custom_call.1']
    #allocation4 [shape = 's32[1]{0}', space=sflag, size = 0x4, scoped, tag = 'scoped memory for tpu_custom_call.1']
    #allocation5 [shape = 'u8[4096]{0}', space=vmem, size = 0x1000, scoped, tag = 'output window, operand 0, single buffered']
    %8 = vsyncpa [#allocation3], 0
    %9 = vsyncpa [#allocation4], 0
    // Predicated region
    $region2: #{tpu_custom_call.1} parent=1 // pred_check
      _
    $region3: #{tpu_custom_call.1} parent=1 // pred_check_branch
      %11 = sbr.rel (0) target = $region5
    $region4: #{tpu_custom_call.1} parent=1 // pred_region
      %s13 = ssub.s32 256, 256
      %14 = vsyncadd [#allocation3], %s13
      %s15 = sshll.u32 [#allocation2], 4
      %s16 = int_to_ptr.vmem [resolvable:$true] %s15
      %21 = dma.hbm_to_vmem [thread:$0]  %s0, 256, %s16, [#allocation3], 128, 128, 8
    $region5: #{tpu_custom_call.1} parent=1 // pred_fallthru
      _
    // Predicated region
    $region6: #{tpu_custom_call.1} parent=1 // pred_check
      _
    $region7: #{tpu_custom_call.1} parent=1 // pred_check_branch
      %23 = sbr.rel (0) target = $region9
    $region8: #{tpu_custom_call.1} parent=1 // pred_region
      _
    $region9: #{tpu_custom_call.1} parent=1 // pred_fallthru
      _
    // Predicated region
    $region10: #{tpu_custom_call.1} parent=1 // pred_check
      _
    $region11: #{tpu_custom_call.1} parent=1 // pred_check_branch
      %25 = sbr.rel (0) target = $region13
    $region12: #{tpu_custom_call.1} parent=1 // pred_region
      _
    $region13: #{tpu_custom_call.1} parent=1 // pred_fallthru
      _
    // Predicated region
    $region14: #{tpu_custom_call.1} parent=1 // pred_check
      _
    $region15: #{tpu_custom_call.1} parent=1 // pred_check_branch
      %27 = sbr.rel (0) target = $region17
    $region16: #{tpu_custom_call.1} parent=1 // pred_region
      %28 = dma.done [#allocation3], 256
    $region17: #{tpu_custom_call.1} parent=1 // pred_fallthru
      _
    %v29 = vld [vmem:[#allocation2] sm:$0xff]
    %v30 = vld [vmem:[#allocation2 + $0x8] sm:$0xff]
    %v31 = vld [vmem:[%s1] sm:$0x1]
    %v32 = vld [vmem:[%s2] sm:$0x1]
    %33 = vadd.xlane.f32.xlu0 %v29
    %v34 = vpop.xlane.xlu0 %33
    %35 = vadd.xlane.f32.xlu0 %v30
    %v36 = vpop.xlane.xlu0 %35
    %v37 = vrcp.pop 128.0
    %v38 = vmul.f32 %v34, %v37
    %v39 = vmul.f32 %v36, %v37
    %v40 = vsub.f32 %v29, %v38
    %v41 = vsub.f32 %v30, %v39
    %v42 = vmul.f32 %v40, %v40
    %v43 = vmul.f32 %v41, %v41
    %44 = vadd.xlane.f32.xlu0 %v42
    %v45 = vpop.xlane.xlu0 %44
    %46 = vadd.xlane.f32.xlu0 %v43
    %v47 = vpop.xlane.xlu0 %46
    %v48 = vmul.f32 %v45, %v37
    %v49 = vmul.f32 %v47, %v37
    %v50 = vadd.f32 %v48, 1e-12
    %v51 = vadd.f32 %v49, 1e-12
    %v52 = vrsqrt.pop %v50
    %v53 = vrsqrt.pop %v51
    %v54 = vmul.f32 %v40, %v52
    %v55 = vmul.f32 %v41, %v53
    %v57 = vlaneseq
    %v58 = vshrl.u32 %v57, 7
    %v59 = vsub.s32 0, %v58
    %v60 = vrot.slane %v31, %v59
    %v62 = vmul.f32 %v54, %v60
    %v63 = vmul.f32 %v55, %v60
    %v65 = vlaneseq
    %v66 = vshrl.u32 %v65, 7
    %v67 = vsub.s32 0, %v66
    %v68 = vrot.slane %v32, %v67
    %v70 = vadd.f32 %v62, %v68
    %v71 = vadd.f32 %v63, %v68
    %v72 = vpack.c.bf16 %v71, %v70
    %v74 = vunpack.c.l.b16 %v72
    %v75 = vunpack.c.h.b16 %v72
    %v76 = vpack.c.b16 %v74, %v74
    %v77 = vpack.c.b16 %v75, %v75
    %80 = vst [vmem:[#allocation5] sm:$0xf] %v76
    %81 = vst [vmem:[#allocation5 + $0x4] sm:$0xf] %v77
    // Predicated region
    $region18: #{tpu_custom_call.1} parent=1 // pred_check
      _
    $region19: #{tpu_custom_call.1} parent=1 // pred_check_branch
      %83 = sbr.rel (0) target = $region21
    $region20: #{tpu_custom_call.1} parent=1 // pred_region
      %s85 = ssub.s32 128, 128
      %86 = vsyncadd [#allocation4], %s85
      %s87 = sshll.u32 [#allocation5], 4
      %s88 = int_to_ptr.vmem [resolvable:$true] %s87
      %93 = dma.vmem_to_hbm [thread:$0]  %s88, 128, %s3, [#allocation4], 64, 64, 4
    $region21: #{tpu_custom_call.1} parent=1 // pred_fallthru
      _
    // Predicated region
    $region22: #{tpu_custom_call.1} parent=1 // pred_check
      _
    $region23: #{tpu_custom_call.1} parent=1 // pred_check_branch
      %95 = sbr.rel (0) target = $region25
    $region24: #{tpu_custom_call.1} parent=1 // pred_region
      %96 = dma.done [#allocation4], 128
    $region25: #{tpu_custom_call.1} parent=1 // pred_fallthru
      _
    %97 = vsyncpa [#allocation3], 1
    %98 = vsyncpa [#allocation4], 1

</llo_original>
